<compile_context>
chip_gen: v7x
topology: tpu7x:2x2x1
jax: 0.10.0
libtpu: 0.0.40
codegen_flags: <defaults>
</compile_context>

<pallas_src>
import jax
import jax.numpy as jnp
from jax import lax
from jax.experimental import pallas as pl
from jax.experimental.pallas import tpu as pltpu


def _round_up(n, m):
    return ((n + m - 1) // m) * m


_MAX_TILE_B = 8192                   # multiple of 128 (lane-dense output width)
_SINGLE_TILE_MAX = 512               # below this: one full-array block, grid=(1,)
_VMEM_BUDGET = 24 * 1024 * 1024      # headroom under the 32 MiB scoped limit
_VMEM_LIMIT = 32 * 1024 * 1024       # explicit scoped-VMEM limit (safe on v5e/v6e/v7x)


def _pick_tile_b(batch, input_size, layer_widths, x_itemsize, param_bytes):
    """Largest batch tile that fits the VMEM budget; >=2 grid steps if batch>512."""
    if batch <= _SINGLE_TILE_MAX:
        # Single full-array block: block dims equal array dims -> always legal,
        # no padding, grid=(1,).
        return batch

    out_size = layer_widths[-1]

    def vmem_bytes(tb):
        b = 2 * tb * input_size * x_itemsize              # double-buffered x
        b += 2 * tb * out_size * 4                        # double-buffered f32 out
        b += sum(tb * w * (4 + 2) for w in layer_widths)  # f32 acc + bf16 act temps
        return b + 2 * param_bytes                        # resident weights/biases

    tile_b = _MAX_TILE_B
    while tile_b > 128 and vmem_bytes(tile_b) > _VMEM_BUDGET:
        tile_b //= 2
    # Cap so the grid has >= 2 steps (megacore sharding on v7x); keep a
    # multiple of 128 so the output's lane dimension stays dense/unmasked.
    tile_b = min(tile_b, _round_up(pl.cdiv(batch, 2), 128))
    return tile_b


def _make_mlp_kernel(num_layers):
    """Fused MLP kernel, feature-major activations (batch on lanes).

    Ref order: x, (w0, b0), ..., (w_{N-1}, b_{N-1}), out
      x:   (tile_b, in)  caller dtype (cast to bf16 in-kernel)
      w_i: (out_i, in_i) bf16 (PyTorch layout), b_i: (out_i, 1) f32
      out: (out_size, tile_b) f32
    """

    def kernel(*refs):
        x_ref = refs[0]
        o_ref = refs[-1]
        params = refs[1:-1]

        x = x_ref[...].astype(jnp.bfloat16)               # (tile_b, in)

        # First layer: W0 @ x^T -> (h0, tile_b); batch lands on lanes.
        w0 = params[0][...]                               # (h0, in) bf16
        b0 = params[1][...]                               # (h0, 1)  f32
        acc = lax.dot_general(
            w0, x, (((1,), (1,)), ((), ())),
            preferred_element_type=jnp.float32) + b0

        if num_layers == 1:                               # no hidden layers
            o_ref[...] = jax.nn.sigmoid(acc).astype(o_ref.dtype)
            return

        # Hidden epilogue: ReLU in f32 (VPU); dropout = identity at inference.
        h = jnp.maximum(acc, 0.0).astype(jnp.bfloat16)    # (h0, tile_b)

        for i in range(1, num_layers - 1):
            w = params[2 * i][...]                        # (h_i, h_{i-1}) bf16
            b = params[2 * i + 1][...]                    # (h_i, 1)       f32
            acc = jnp.dot(w, h, preferred_element_type=jnp.float32) + b
            h = jnp.maximum(acc, 0.0).astype(jnp.bfloat16)

        # Final layer + sigmoid (EUP), lane-dense store.
        w = params[-2][...]                               # (out_size, h_last) bf16
        b = params[-1][...]                               # (out_size, 1)      f32
        acc = jnp.dot(w, h, preferred_element_type=jnp.float32) + b
        o_ref[...] = jax.nn.sigmoid(acc).astype(o_ref.dtype)

    return kernel


def prepare_params(weights, biases):
    """One-time (hoisted) conversion of PyTorch-layout params to kernel layout."""
    kw = [jnp.asarray(w, jnp.bfloat16) for w in weights]              # (out, in)
    kb = [jnp.asarray(b, jnp.float32).reshape(-1, 1) for b in biases]  # (out, 1)
    return {
        "weights": kw,
        "biases": kb,
        "input_size": int(weights[0].shape[1]),
        "output_size": int(weights[-1].shape[0]),
    }


def arvato_classifier_forward(x, params):
    """Run the fused MLP forward pass.

    Args:
      x: (batch, input_size) array (f32 or bf16).
      params: dict from prepare_params().
    Returns:
      (batch, output_size) float32 with sigmoid applied.
    """
    weights, biases = params["weights"], params["biases"]
    num_layers = len(weights)
    input_size = params["input_size"]
    out_size = params["output_size"]
    layer_widths = [int(w.shape[0]) for w in weights]

    x = jnp.asarray(x)                       # no dtype cast / pad in the wrapper
    batch = x.shape[0]

    param_bytes = (sum(int(w.size) * w.dtype.itemsize for w in weights)
                   + sum(int(b.size) * b.dtype.itemsize for b in biases))
    tile_b = _pick_tile_b(batch, input_size, layer_widths,
                          x.dtype.itemsize, param_bytes)
    grid = (pl.cdiv(batch, tile_b),)         # boundary block padded/masked by Pallas

    in_specs = [pl.BlockSpec((tile_b, input_size), lambda i: (i, 0))]
    kernel_args = [x]
    for w, b in zip(weights, biases):
        # Constant index maps -> params fetched once, resident in VMEM.
        in_specs.append(pl.BlockSpec(w.shape, lambda i: (0, 0)))
        in_specs.append(pl.BlockSpec(b.shape, lambda i: (0, 0)))
        kernel_args.append(w)
        kernel_args.append(b)

    out_specs = pl.BlockSpec((out_size, tile_b), lambda i: (0, i))
    out_shape = jax.ShapeDtypeStruct((out_size, batch), jnp.float32)

    flops = 2 * batch * sum(int(w.size) for w in weights)
    bytes_accessed = (batch * input_size * x.dtype.itemsize
                      + out_size * batch * 4
                      + param_bytes)
    transcendentals = batch * out_size       # sigmoid on EUP

    out_t = pl.pallas_call(
        _make_mlp_kernel(num_layers),
        grid=grid,
        in_specs=in_specs,
        out_specs=out_specs,
        out_shape=out_shape,
        compiler_params=pltpu.CompilerParams(
            dimension_semantics=("parallel",),
            vmem_limit_bytes=_VMEM_LIMIT),
        cost_estimate=pl.CostEstimate(
            flops=flops,
            transcendentals=transcendentals,
            bytes_accessed=bytes_accessed),
    )(*kernel_args)

    # (out_size, batch) -> (batch, out_size); trivial for out_size == 1.
    return out_t.T


def init_params(key, input_size, hidden_sizes, output_size):
    """Deterministic PyTorch-style init: U(-1/sqrt(fan_in), 1/sqrt(fan_in))."""
    sizes = [input_size] + list(hidden_sizes) + [output_size]
    weights, biases = [], []
    for i in range(len(sizes) - 1):
        fan_in, fan_out = sizes[i], sizes[i + 1]
        key, wk, bk = jax.random.split(key, 3)
        bound = 1.0 / (fan_in ** 0.5)
        # PyTorch weight layout: (out_features, in_features)
        w = jax.random.uniform(wk, (fan_out, fan_in), jnp.float32, -bound, bound)
        b = jax.random.uniform(bk, (fan_out,), jnp.float32, -bound, bound)
        weights.append(w)
        biases.append(b)
    return weights, biases


if __name__ == "__main__":
    # Small shapes consistent with the module: an MLP binary classifier.
    input_size = 32
    hidden_sizes = [64, 32]
    output_size = 1

    key = jax.random.PRNGKey(0)
    key, wk = jax.random.split(key)
    weights, biases = init_params(wk, input_size, hidden_sizes, output_size)
    params = prepare_params(weights, biases)       # hoisted, one-time layout prep

    def reference(xin):
        # Plain-JAX reference with matching precision (bf16 matmul operands,
        # f32 accumulation / epilogue) so the comparison is meaningful.
        h = jnp.asarray(xin, jnp.bfloat16)
        n = len(weights)
        for i, (w, b) in enumerate(zip(weights, biases)):
            acc = lax.dot_general(h, jnp.asarray(w, jnp.bfloat16),
                                  (((1,), (1,)), ((), ())),
                                  preferred_element_type=jnp.float32) + b[None, :]
            if i < n - 1:
                h = jnp.maximum(acc, 0.0).astype(jnp.bfloat16)
            else:
                return jax.nn.sigmoid(acc)

    # batch=8   : small primary test (single full-array tile, grid=(1,))
    # batch=1024: multi-tile path (tile_b=512, grid=(2,), even division)
    # batch=1000: multi-tile path with a padded/masked boundary block
    for batch in (8, 1024, 1000):
        key, xk = jax.random.split(key)
        x = jax.random.normal(xk, (batch, input_size), jnp.float32)
        out = jax.block_until_ready(arvato_classifier_forward(x, params))
        ref = jax.block_until_ready(reference(x))
        assert out.shape == (batch, output_size), out.shape
        assert jnp.allclose(out, ref, atol=2e-2, rtol=2e-2), \
            f"mismatch vs reference at batch={batch}"

    print("KERNEL_OK")
</pallas_src>

<mosaic_0001>
module attributes {stable_mosaic.version = 11 : i64} {
  func.func @kernel(%arg0: i32, %arg1: memref<8x32xf32, #tpu.memory_space<vmem>>, %arg2: memref<64x32xbf16, #tpu.memory_space<vmem>>, %arg3: memref<64x1xf32, #tpu.memory_space<vmem>>, %arg4: memref<32x64xbf16, #tpu.memory_space<vmem>>, %arg5: memref<32x1xf32, #tpu.memory_space<vmem>>, %arg6: memref<1x32xbf16, #tpu.memory_space<vmem>>, %arg7: memref<1x1xf32, #tpu.memory_space<vmem>>, %arg8: memref<1x8xf32, #tpu.memory_space<vmem>>) attributes {dimension_semantics = [#tpu.dimension_semantics<parallel>], iteration_bounds = array<i64: 1>, scalar_prefetch = 0 : i64, scratch_operands = 0 : i64, tpu.core_type = #tpu.core_type<tc>, window_params = [{transform_indices = @transform_0, window_bounds = array<i64: 8, 32>}, {pipeline_mode = #tpu.pipeline_mode<synchronous>, transform_indices = @transform_1, window_bounds = array<i64: 64, 32>}, {pipeline_mode = #tpu.pipeline_mode<synchronous>, transform_indices = @transform_2, window_bounds = array<i64: 64, 1>}, {pipeline_mode = #tpu.pipeline_mode<synchronous>, transform_indices = @transform_3, window_bounds = array<i64: 32, 64>}, {pipeline_mode = #tpu.pipeline_mode<synchronous>, transform_indices = @transform_4, window_bounds = array<i64: 32, 1>}, {pipeline_mode = #tpu.pipeline_mode<synchronous>, transform_indices = @transform_5, window_bounds = array<i64: 1, 32>}, {pipeline_mode = #tpu.pipeline_mode<synchronous>, transform_indices = @transform_6, window_bounds = array<i64: 1, 1>}, {transform_indices = @transform_7, window_bounds = array<i64: 1, 8>}]} {
    %c0 = arith.constant 0 : index
    %c0_0 = arith.constant 0 : index
    %0 = vector.load %arg1[%c0, %c0_0] : memref<8x32xf32, #tpu.memory_space<vmem>>, vector<8x32xf32>
    %1 = arith.truncf %0 : vector<8x32xf32> to vector<8x32xbf16>
    %c0_1 = arith.constant 0 : index
    %c0_2 = arith.constant 0 : index
    %2 = vector.load %arg2[%c0_1, %c0_2] : memref<64x32xbf16, #tpu.memory_space<vmem>>, vector<64x32xbf16>
    %c0_3 = arith.constant 0 : index
    %c0_4 = arith.constant 0 : index
    %3 = vector.load %arg3[%c0_3, %c0_4] : memref<64x1xf32, #tpu.memory_space<vmem>>, vector<64x1xf32>
    %cst = arith.constant dense<0.000000e+00> : vector<64x8xf32>
    %4 = tpu.matmul %2, %1, %cst {dimension_numbers = #tpu.dot_dimension_numbers<[1], [1], [0], [0], [0, 0, 1, 0], [], []>} : vector<64x32xbf16>, vector<8x32xbf16>, vector<64x8xf32> -> vector<64x8xf32>
    %5 = vector.broadcast %3 : vector<64x1xf32> to vector<64x8xf32>
    %6 = arith.addf %4, %5 : vector<64x8xf32>
    %cst_5 = arith.constant 0.000000e+00 : f32
    %7 = vector.broadcast %cst_5 : f32 to vector<64x8xf32>
    %8 = arith.maximumf %6, %7 : vector<64x8xf32>
    %9 = arith.truncf %8 : vector<64x8xf32> to vector<64x8xbf16>
    %c0_6 = arith.constant 0 : index
    %c0_7 = arith.constant 0 : index
    %10 = vector.load %arg4[%c0_6, %c0_7] : memref<32x64xbf16, #tpu.memory_space<vmem>>, vector<32x64xbf16>
    %c0_8 = arith.constant 0 : index
    %c0_9 = arith.constant 0 : index
    %11 = vector.load %arg5[%c0_8, %c0_9] : memref<32x1xf32, #tpu.memory_space<vmem>>, vector<32x1xf32>
    %cst_10 = arith.constant dense<0.000000e+00> : vector<32x8xf32>
    %12 = tpu.matmul %10, %9, %cst_10 {dimension_numbers = #tpu.dot_dimension_numbers<[1], [0], [0], [1], [0, 0, 1, 1], [], []>} : vector<32x64xbf16>, vector<64x8xbf16>, vector<32x8xf32> -> vector<32x8xf32>
    %13 = vector.broadcast %11 : vector<32x1xf32> to vector<32x8xf32>
    %14 = arith.addf %12, %13 : vector<32x8xf32>
    %cst_11 = arith.constant 0.000000e+00 : f32
    %15 = vector.broadcast %cst_11 : f32 to vector<32x8xf32>
    %16 = arith.maximumf %14, %15 : vector<32x8xf32>
    %17 = arith.truncf %16 : vector<32x8xf32> to vector<32x8xbf16>
    %c0_12 = arith.constant 0 : index
    %c0_13 = arith.constant 0 : index
    %18 = vector.load %arg6[%c0_12, %c0_13] : memref<1x32xbf16, #tpu.memory_space<vmem>>, vector<1x32xbf16>
    %c0_14 = arith.constant 0 : index
    %c0_15 = arith.constant 0 : index
    %19 = vector.load %arg7[%c0_14, %c0_15] : memref<1x1xf32, #tpu.memory_space<vmem>>, vector<1x1xf32>
    %cst_16 = arith.constant dense<0.000000e+00> : vector<1x8xf32>
    %20 = tpu.matmul %18, %17, %cst_16 {dimension_numbers = #tpu.dot_dimension_numbers<[1], [0], [0], [1], [0, 0, 1, 1], [], []>} : vector<1x32xbf16>, vector<32x8xbf16>, vector<1x8xf32> -> vector<1x8xf32>
    %21 = vector.broadcast %19 : vector<1x1xf32> to vector<1x8xf32>
    %22 = arith.addf %20, %21 : vector<1x8xf32>
    %23 = arith.negf %22 : vector<1x8xf32>
    %24 = math.exp %23 : vector<1x8xf32>
    %cst_17 = arith.constant 1.000000e+00 : f32
    %25 = vector.broadcast %cst_17 : f32 to vector<1x8xf32>
    %26 = arith.addf %25, %24 : vector<1x8xf32>
    %27 = arith.divf %25, %26 : vector<1x8xf32>
    %c0_18 = arith.constant 0 : index
    %c0_19 = arith.constant 0 : index
    %28 = vector.load %arg8[%c0_18, %c0_19] : memref<1x8xf32, #tpu.memory_space<vmem>>, vector<1x8xf32>
    tpu.vector_store %arg8[%c0_18, %c0_19], %27 {strides = array<i32>} : memref<1x8xf32, #tpu.memory_space<vmem>>, vector<1x8xf32>,
    return
  }
  func.func @transform_0(%arg0: i32) -> (i32, i32) {
    %c0_i32 = arith.constant 0 : i32
    %c0_i32_0 = arith.constant 0 : i32
    return %arg0, %c0_i32 : i32, i32
  }
  func.func @transform_1(%arg0: i32) -> (i32, i32) {
    %c0_i32 = arith.constant 0 : i32
    %c0_i32_0 = arith.constant 0 : i32
    %c0_i32_1 = arith.constant 0 : i32
    return %c0_i32, %c0_i32_0 : i32, i32
  }
  func.func @transform_2(%arg0: i32) -> (i32, i32) {
    %c0_i32 = arith.constant 0 : i32
    %c0_i32_0 = arith.constant 0 : i32
    %c0_i32_1 = arith.constant 0 : i32
    return %c0_i32, %c0_i32_0 : i32, i32
  }
  func.func @transform_3(%arg0: i32) -> (i32, i32) {
    %c0_i32 = arith.constant 0 : i32
    %c0_i32_0 = arith.constant 0 : i32
    %c0_i32_1 = arith.constant 0 : i32
    return %c0_i32, %c0_i32_0 : i32, i32
  }
  func.func @transform_4(%arg0: i32) -> (i32, i32) {
    %c0_i32 = arith.constant 0 : i32
    %c0_i32_0 = arith.constant 0 : i32
    %c0_i32_1 = arith.constant 0 : i32
    return %c0_i32, %c0_i32_0 : i32, i32
  }
  func.func @transform_5(%arg0: i32) -> (i32, i32) {
    %c0_i32 = arith.constant 0 : i32
    %c0_i32_0 = arith.constant 0 : i32
    %c0_i32_1 = arith.constant 0 : i32
    return %c0_i32, %c0_i32_0 : i32, i32
  }
  func.func @transform_6(%arg0: i32) -> (i32, i32) {
    %c0_i32 = arith.constant 0 : i32
    %c0_i32_0 = arith.constant 0 : i32
    %c0_i32_1 = arith.constant 0 : i32
    return %c0_i32, %c0_i32_0 : i32, i32
  }
  func.func @transform_7(%arg0: i32) -> (i32, i32) {
    %c0_i32 = arith.constant 0 : i32
    %c0_i32_0 = arith.constant 0 : i32
    return %c0_i32, %arg0 : i32, i32
  }
}

</mosaic_0001>

<llo_original>
// kernel: tpu_custom_call.1
$region0: #{tpu_custom_call.1}
  #allocation0 [shape = 'u32[]', space=smem, size = 0x4, offset = 0x4, fixed_abs, tag = 'smem constant byte address 0x4 - core index']
  #allocation1 [shape = 'u32[144,128]{1,0:T(1,128)}', space=vmem, size = 0x12000, scoped, tag = 'internal scratch']
  #allocation2 [shape = 'f32[1,1]{1,0:T(1,128)S(1)}', space=vmem, size = 0x200, scoped, tag = 'scoped memory for tpu_custom_call.1']
  %s0 = inlined_call_operand.vmem [shape: f32[8,32], index: 0, kind: input, shape index: {}]
  %s1 = inlined_call_operand.vmem [shape: bf16[64,32], index: 1, kind: input, shape index: {}]
  %s2 = inlined_call_operand.vmem [shape: f32[64,1], index: 2, kind: input, shape index: {}]
  %s3 = inlined_call_operand.vmem [shape: bf16[32,64], index: 3, kind: input, shape index: {}]
  %s4 = inlined_call_operand.vmem [shape: f32[32,1], index: 4, kind: input, shape index: {}]
  %s5 = inlined_call_operand.vmem [shape: bf16[1,32], index: 5, kind: input, shape index: {}]
  %s6 = inlined_call_operand.<no memory space> [shape: f32[1,1], index: 6, kind: input, shape index: {}]
  %s7 = inlined_call_operand.hbm [shape: f32[1,8], index: 7, kind: output, shape index: {}]
  %s8 = sld [smem:[#allocation0]]
  $region38: #{tpu_custom_call.1} parent=0
    _
  %s10 = ssub.s32 1, %s8
  %s11 = scalar_select 0, %s10, %s8
  %v12 = vstv %s6
  %13 = vst [vmem:[#allocation2] sm:$0x1] %v12
  $region1: #{tpu_custom_call.1} parent=0
    #allocation3 [shape = 'u8[512]{0}', space=vmem, size = 0x400, scoped, tag = 'output window, operand 0, single buffered']
    #allocation4 [shape = 's32[1]{0}', space=sflag, size = 0x4, scoped, tag = 'scoped memory for tpu_custom_call.1']
    %14 = vsyncpa [#allocation4], 0
    // Predicated region
    $region2: #{tpu_custom_call.1} parent=1 // pred_check
      _
    $region3: #{tpu_custom_call.1} parent=1 // pred_check_branch
      %16 = sbr.rel (0) target = $region5
    $region4: #{tpu_custom_call.1} parent=1 // pred_region
      _
    $region5: #{tpu_custom_call.1} parent=1 // pred_fallthru
      _
    // Predicated region
    $region6: #{tpu_custom_call.1} parent=1 // pred_check
      _
    $region7: #{tpu_custom_call.1} parent=1 // pred_check_branch
      %18 = sbr.rel (0) target = $region9
    $region8: #{tpu_custom_call.1} parent=1 // pred_region
      _
    $region9: #{tpu_custom_call.1} parent=1 // pred_fallthru
      _
    // Predicated region
    $region10: #{tpu_custom_call.1} parent=1 // pred_check
      _
    $region11: #{tpu_custom_call.1} parent=1 // pred_check_branch
      %20 = sbr.rel (0) target = $region13
    $region12: #{tpu_custom_call.1} parent=1 // pred_region
      _
    $region13: #{tpu_custom_call.1} parent=1 // pred_fallthru
      _
    // Predicated region
    $region14: #{tpu_custom_call.1} parent=1 // pred_check
      _
    $region15: #{tpu_custom_call.1} parent=1 // pred_check_branch
      %22 = sbr.rel (0) target = $region17
    $region16: #{tpu_custom_call.1} parent=1 // pred_region
      _
    $region17: #{tpu_custom_call.1} parent=1 // pred_fallthru
      _
    // Predicated region
    $region18: #{tpu_custom_call.1} parent=1 // pred_check
      _
    $region19: #{tpu_custom_call.1} parent=1 // pred_check_branch
      %24 = sbr.rel (0) target = $region21
    $region20: #{tpu_custom_call.1} parent=1 // pred_region
      _
    $region21: #{tpu_custom_call.1} parent=1 // pred_fallthru
      _
    // Predicated region
    $region22: #{tpu_custom_call.1} parent=1 // pred_check
      _
    $region23: #{tpu_custom_call.1} parent=1 // pred_check_branch
      %26 = sbr.rel (0) target = $region25
    $region24: #{tpu_custom_call.1} parent=1 // pred_region
      _
    $region25: #{tpu_custom_call.1} parent=1 // pred_fallthru
      _
    // Predicated region
    $region26: #{tpu_custom_call.1} parent=1 // pred_check
      _
    $region27: #{tpu_custom_call.1} parent=1 // pred_check_branch
      %28 = sbr.rel (0) target = $region29
    $region28: #{tpu_custom_call.1} parent=1 // pred_region
      _
    $region29: #{tpu_custom_call.1} parent=1 // pred_fallthru
      _
    %v30 = vld [vmem:[%s0] sm:$0xff]
    %v31 = vpack.c.bf16 %v30, %v30
    %v32 = vld [vmem:[%s1] sm:$0xf]
    %v33 = vld [vmem:[%s1 + $0x4] sm:$0xf]
    %v34 = vld [vmem:[%s1 + $0x8] sm:$0xf]
    %v35 = vld [vmem:[%s1 + $0xc] sm:$0xf]
    %v36 = vld [vmem:[%s1 + $0x10] sm:$0xf]
    %v37 = vld [vmem:[%s1 + $0x14] sm:$0xf]
    %v38 = vld [vmem:[%s1 + $0x18] sm:$0xf]
    %v39 = vld [vmem:[%s1 + $0x1c] sm:$0xf]
    %v40 = vld [vmem:[%s2] sm:$0xff]
    %v41 = vld [vmem:[%s2 + $0x8] sm:$0xff]
    %v42 = vld [vmem:[%s2 + $0x10] sm:$0xff]
    %v43 = vld [vmem:[%s2 + $0x18] sm:$0xff]
    %v44 = vld [vmem:[%s2 + $0x20] sm:$0xff]
    %v45 = vld [vmem:[%s2 + $0x28] sm:$0xff]
    %v46 = vld [vmem:[%s2 + $0x30] sm:$0xff]
    %v47 = vld [vmem:[%s2 + $0x38] sm:$0xff]
    %49 = vset.pattern.permute.xlu0 0
    %50 = vperm.xlu0 %49, %v40
    %v51 = vpop.permute.xlu0 %50
    %54 = vset.pattern.permute.xlu0 0
    %55 = vperm.xlu0 %54, %v41
    %v56 = vpop.permute.xlu0 %55
    %59 = vset.pattern.permute.xlu0 0
    %60 = vperm.xlu0 %59, %v42
    %v61 = vpop.permute.xlu0 %60
    %64 = vset.pattern.permute.xlu0 0
    %65 = vperm.xlu0 %64, %v43
    %v66 = vpop.permute.xlu0 %65
    %69 = vset.pattern.permute.xlu0 0
    %70 = vperm.xlu0 %69, %v44
    %v71 = vpop.permute.xlu0 %70
    %74 = vset.pattern.permute.xlu0 0
    %75 = vperm.xlu0 %74, %v45
    %v76 = vpop.permute.xlu0 %75
    %79 = vset.pattern.permute.xlu0 0
    %80 = vperm.xlu0 %79, %v46
    %v81 = vpop.permute.xlu0 %80
    %84 = vset.pattern.permute.xlu0 0
    %85 = vperm.xlu0 %84, %v47
    %v86 = vpop.permute.xlu0 %85
    %v96 = vunpack.c.l.b16 %v32
    %v97 = vunpack.c.l.b16 %v33
    %v98 = vunpack.c.l.b16 %v34
    %v99 = vunpack.c.l.b16 %v35
    %v100 = vunpack.c.l.b16 %v36
    %v101 = vunpack.c.l.b16 %v37
    %v102 = vunpack.c.l.b16 %v38
    %v103 = vunpack.c.l.b16 %v39
    %v104 = vpack.c.b16 %v97, %v96
    %v105 = vpack.c.b16 %v99, %v98
    %v106 = vpack.c.b16 %v101, %v100
    %v107 = vpack.c.b16 %v103, %v102
    %vm108 = vcmask 261120
    %v110 = vsel %vm108, %v104, 0
    %v113 = vsel %vm108, %v105, 0
    %v116 = vsel %vm108, %v106, 0
    %v119 = vsel %vm108, %v107, 0
    %v122 = vsel %vm108, %v31, 0
    %124 = vmatprep.subr.bf16.mxu0 0
    %125 = vmatpush1.bf16.xpose.msra.mxu0 %v122
    %126 = vmatprep.subr.bf16.mxu0 0
    %127 = vmatpush1.bf16.xpose.msra.mxu0 0
    %128 = vmatprep.subr.bf16.mxu0 0
    %129 = vmatpush1.bf16.xpose.msra.mxu0 0
    %130 = vmatprep.subr.bf16.mxu0 0
    %131 = vmatpush1.bf16.xpose.msra.mxu0 0
    %132 = vmatprep.subr.bf16.mxu0 0
    %133 = vmatpush1.bf16.xpose.msra.mxu0 0
    %134 = vmatprep.subr.bf16.mxu0 0
    %135 = vmatpush1.bf16.xpose.msra.mxu0 0
    %136 = vmatprep.subr.bf16.mxu0 0
    %137 = vmatpush1.bf16.xpose.msra.mxu0 0
    %138 = vmatprep.subr.bf16.mxu0 0
    %139 = vmatpush1.bf16.xpose.msra.mxu0 0
    %140 = vmatprep.subr.bf16.mxu0 0
    %141 = vmatpush1.bf16.xpose.msra.mxu0 0
    %142 = vmatprep.subr.bf16.mxu0 0
    %143 = vmatpush1.bf16.xpose.msra.mxu0 0
    %144 = vmatprep.subr.bf16.mxu0 0
    %145 = vmatpush1.bf16.xpose.msra.mxu0 0
    %146 = vmatprep.subr.bf16.mxu0 0
    %147 = vmatpush1.bf16.xpose.msra.mxu0 0
    %148 = vmatprep.subr.bf16.mxu0 0
    %149 = vmatpush1.bf16.xpose.msra.mxu0 0
    %150 = vmatprep.subr.bf16.mxu0 0
    %151 = vmatpush1.bf16.xpose.msra.mxu0 0
    %152 = vmatprep.subr.bf16.mxu0 0
    %153 = vmatpush1.bf16.xpose.msra.mxu0 0
    %154 = vmatprep.subr.bf16.mxu0 0
    %155 = vmatpush1.bf16.xpose.msra.mxu0 0
    %156 = vmatprep.mubr.bf16.mxu0 0
    %157 = vmatmul.mubr.bf16.gmra.mrb[0].mxu0 %v110
    %v158 = vpop.f32.mrb[0].mxu0
    %v159 = vadd.f32 %v51, %v158
    %v160 = vpop.f32.mrb[0].mxu0
    %v161 = vpop.f32.mrb[0].mxu0
    %v162 = vadd.f32 %v56, %v161
    %v163 = vpop.f32.mrb[0].mxu0
    %164 = vmatprep.mubr.bf16.mxu0 0
    %165 = vmatmul.mubr.bf16.gmra.mrb[0].mxu0 %v113
    %v166 = vpop.f32.mrb[0].mxu0
    %v167 = vadd.f32 %v61, %v166
    %v168 = vpop.f32.mrb[0].mxu0
    %v169 = vpop.f32.mrb[0].mxu0
    %v170 = vadd.f32 %v66, %v169
    %v171 = vpop.f32.mrb[0].mxu0
    %172 = vmatprep.mubr.bf16.mxu0 0
    %173 = vmatmul.mubr.bf16.gmra.mrb[0].mxu0 %v116
    %v174 = vpop.f32.mrb[0].mxu0
    %v175 = vadd.f32 %v71, %v174
    %v176 = vpop.f32.mrb[0].mxu0
    %v177 = vpop.f32.mrb[0].mxu0
    %v178 = vadd.f32 %v76, %v177
    %v179 = vpop.f32.mrb[0].mxu0
    %180 = vmatprep.mubr.bf16.mxu0 0
    %181 = vmatmul.mubr.bf16.gmra.mrb[0].mxu0 %v119
    %v182 = vpop.f32.mrb[0].mxu0
    %v183 = vadd.f32 %v81, %v182
    %v184 = vpop.f32.mrb[0].mxu0
    %v185 = vpop.f32.mrb[0].mxu0
    %v186 = vadd.f32 %v86, %v185
    %v187 = vpop.f32.mrb[0].mxu0
    %188 = vdwg.mxu0
    %v189 = vmax.f32 %v159, 0.0
    %v190 = vmax.f32 %v162, 0.0
    %v191 = vmax.f32 %v167, 0.0
    %v192 = vmax.f32 %v170, 0.0
    %v193 = vmax.f32 %v175, 0.0
    %v194 = vmax.f32 %v178, 0.0
    %v195 = vmax.f32 %v183, 0.0
    %v196 = vmax.f32 %v186, 0.0
    %v197 = vpack.c.bf16 %v190, %v189
    %v198 = vpack.c.bf16 %v192, %v191
    %v199 = vpack.c.bf16 %v194, %v193
    %v200 = vpack.c.bf16 %v196, %v195
    %v201 = vld [vmem:[%s3] sm:$0xf]
    %v202 = vld [vmem:[%s3 + $0x4] sm:$0xf]
    %v203 = vld [vmem:[%s3 + $0x8] sm:$0xf]
    %v204 = vld [vmem:[%s3 + $0xc] sm:$0xf]
    %v205 = vld [vmem:[%s4] sm:$0xff]
    %v206 = vld [vmem:[%s4 + $0x8] sm:$0xff]
    %v207 = vld [vmem:[%s4 + $0x10] sm:$0xff]
    %v208 = vld [vmem:[%s4 + $0x18] sm:$0xff]
    %210 = vset.pattern.permute.xlu0 0
    %211 = vperm.xlu0 %210, %v205
    %v212 = vpop.permute.xlu0 %211
    %215 = vset.pattern.permute.xlu0 0
    %216 = vperm.xlu0 %215, %v206
    %v217 = vpop.permute.xlu0 %216
    %220 = vset.pattern.permute.xlu0 0
    %221 = vperm.xlu0 %220, %v207
    %v222 = vpop.permute.xlu0 %221
    %225 = vset.pattern.permute.xlu0 0
    %226 = vperm.xlu0 %225, %v208
    %v227 = vpop.permute.xlu0 %226
    %v233 = vunpack.c.l.b16 %v201
    %v234 = vunpack.c.l.b16 %v202
    %v235 = vunpack.c.l.b16 %v203
    %v236 = vunpack.c.l.b16 %v204
    %v237 = vpack.c.b16 %v234, %v233
    %v238 = vpack.c.b16 %v236, %v235
    %vm239 = vcmask 523264
    %v241 = vsel %vm239, %v237, 0
    %v244 = vsel %vm239, %v238, 0
    %246 = vmatprep.subr.bf16.mxu0 0
    %247 = vmatpush1.bf16.msra.mxu0 %v197
    %248 = vmatprep.subr.bf16.mxu0 0
    %249 = vmatpush1.bf16.msra.mxu0 %v198
    %250 = vmatprep.subr.bf16.mxu0 0
    %251 = vmatpush1.bf16.msra.mxu0 %v199
    %252 = vmatprep.subr.bf16.mxu0 0
    %253 = vmatpush1.bf16.msra.mxu0 %v200
    %254 = vmatprep.subr.bf16.mxu0 0
    %255 = vmatpush1.bf16.msra.mxu0 0
    %256 = vmatprep.subr.bf16.mxu0 0
    %257 = vmatpush1.bf16.msra.mxu0 0
    %258 = vmatprep.subr.bf16.mxu0 0
    %259 = vmatpush1.bf16.msra.mxu0 0
    %260 = vmatprep.subr.bf16.mxu0 0
    %261 = vmatpush1.bf16.msra.mxu0 0
    %262 = vmatprep.subr.bf16.mxu0 0
    %263 = vmatpush1.bf16.msra.mxu0 0
    %264 = vmatprep.subr.bf16.mxu0 0
    %265 = vmatpush1.bf16.msra.mxu0 0
    %266 = vmatprep.subr.bf16.mxu0 0
    %267 = vmatpush1.bf16.msra.mxu0 0
    %268 = vmatprep.subr.bf16.mxu0 0
    %269 = vmatpush1.bf16.msra.mxu0 0
    %270 = vmatprep.subr.bf16.mxu0 0
    %271 = vmatpush1.bf16.msra.mxu0 0
    %272 = vmatprep.subr.bf16.mxu0 0
    %273 = vmatpush1.bf16.msra.mxu0 0
    %274 = vmatprep.subr.bf16.mxu0 0
    %275 = vmatpush1.bf16.msra.mxu0 0
    %276 = vmatprep.subr.bf16.mxu0 0
    %277 = vmatpush1.bf16.msra.mxu0 0
    %278 = vmatprep.mubr.bf16.mxu0 0
    %279 = vmatmul.mubr.bf16.gmra.mrb[0].mxu0 %v241
    %v280 = vpop.f32.mrb[0].mxu0
    %v281 = vadd.f32 %v212, %v280
    %v282 = vpop.f32.mrb[0].mxu0
    %v283 = vpop.f32.mrb[0].mxu0
    %v284 = vadd.f32 %v217, %v283
    %v285 = vpop.f32.mrb[0].mxu0
    %286 = vmatprep.mubr.bf16.mxu0 0
    %287 = vmatmul.mubr.bf16.gmra.mrb[0].mxu0 %v244
    %v288 = vpop.f32.mrb[0].mxu0
    %v289 = vadd.f32 %v222, %v288
    %v290 = vpop.f32.mrb[0].mxu0
    %v291 = vpop.f32.mrb[0].mxu0
    %v292 = vadd.f32 %v227, %v291
    %v293 = vpop.f32.mrb[0].mxu0
    %294 = vdwg.mxu0
    %v295 = vmax.f32 %v281, 0.0
    %v296 = vmax.f32 %v284, 0.0
    %v297 = vmax.f32 %v289, 0.0
    %v298 = vmax.f32 %v292, 0.0
    %v299 = vpack.c.bf16 %v296, %v295
    %v300 = vpack.c.bf16 %v298, %v297
    %v301 = vld [vmem:[%s5] sm:$0x1]
    %v302 = vld [vmem:[#allocation2] sm:$0x1]
    %304 = vset.pattern.permute.xlu0 0
    %305 = vperm.xlu0 %304, %v302
    %v306 = vpop.permute.xlu0 %305
    %v308 = vlaneseq
    %v309 = vshrl.u32 %v308, 7
    %v310 = vsub.s32 0, %v309
    %v311 = vrot.slane %v306, %v310
    %v313 = vsel %vm108, %v301, 0
    %315 = vmatprep.subr.bf16.mxu0 0
    %316 = vmatpush1.bf16.msra.mxu0 %v299
    %317 = vmatprep.subr.bf16.mxu0 0
    %318 = vmatpush1.bf16.msra.mxu0 %v300
    %319 = vmatprep.subr.bf16.mxu0 0
    %320 = vmatpush1.bf16.msra.mxu0 0
    %321 = vmatprep.subr.bf16.mxu0 0
    %322 = vmatpush1.bf16.msra.mxu0 0
    %323 = vmatprep.subr.bf16.mxu0 0
    %324 = vmatpush1.bf16.msra.mxu0 0
    %325 = vmatprep.subr.bf16.mxu0 0
    %326 = vmatpush1.bf16.msra.mxu0 0
    %327 = vmatprep.subr.bf16.mxu0 0
    %328 = vmatpush1.bf16.msra.mxu0 0
    %329 = vmatprep.subr.bf16.mxu0 0
    %330 = vmatpush1.bf16.msra.mxu0 0
    %331 = vmatprep.subr.bf16.mxu0 0
    %332 = vmatpush1.bf16.msra.mxu0 0
    %333 = vmatprep.subr.bf16.mxu0 0
    %334 = vmatpush1.bf16.msra.mxu0 0
    %335 = vmatprep.subr.bf16.mxu0 0
    %336 = vmatpush1.bf16.msra.mxu0 0
    %337 = vmatprep.subr.bf16.mxu0 0
    %338 = vmatpush1.bf16.msra.mxu0 0
    %339 = vmatprep.subr.bf16.mxu0 0
    %340 = vmatpush1.bf16.msra.mxu0 0
    %341 = vmatprep.subr.bf16.mxu0 0
    %342 = vmatpush1.bf16.msra.mxu0 0
    %343 = vmatprep.subr.bf16.mxu0 0
    %344 = vmatpush1.bf16.msra.mxu0 0
    %345 = vmatprep.subr.bf16.mxu0 0
    %346 = vmatpush1.bf16.msra.mxu0 0
    %347 = vmatprep.mubr.bf16.mxu0 0
    %348 = vmatmul.mubr.bf16.gmra.mrb[0].mxu0 %v313
    %v349 = vpop.f32.mrb[0].mxu0
    %v350 = vadd.f32 %v311, %v349
    %v351 = vpop.f32.mrb[0].mxu0
    %v352 = vpop.f32.mrb[0].mxu0
    %v353 = vpop.f32.mrb[0].mxu0
    %354 = vdwg.mxu0
    %v355 = vxor.u32 %v350, 2147483648
    %v356 = vmul.f32 %v355, 1.442695
    %v357 = vpow.pop %v356
    %v358 = vadd.f32 %v357, 1.0
    %v359 = vrcp.pop %v358
    %v360 = vmul.f32 1.0, %v359
    %vm361 = vcmask 57344
    %362 = vst.msk [vmem:[#allocation3] sm:$0x1] %vm361, %v360
    // Predicated region
    $region30: #{tpu_custom_call.1} parent=1 // pred_check
      _
    $region31: #{tpu_custom_call.1} parent=1 // pred_check_branch
      %364 = sbr.rel (0) target = $region33
    $region32: #{tpu_custom_call.1} parent=1 // pred_region
      %s366 = ssub.s32 16, 16
      %367 = vsyncadd [#allocation4], %s366
      %s369 = sshll.u32 [#allocation3], 4
      %s370 = int_to_ptr.vmem [resolvable:$true] %s369
      %372 = dma.vmem_to_hbm [thread:$0]  %s370, 16, %s7, [#allocation4]
    $region33: #{tpu_custom_call.1} parent=1 // pred_fallthru
      _
    // Predicated region
    $region34: #{tpu_custom_call.1} parent=1 // pred_check
      _
    $region35: #{tpu_custom_call.1} parent=1 // pred_check_branch
      %374 = sbr.rel (0) target = $region37
    $region36: #{tpu_custom_call.1} parent=1 // pred_region
      %375 = dma.done [#allocation4], 16
    $region37: #{tpu_custom_call.1} parent=1 // pred_fallthru
      _
    %376 = vsyncpa [#allocation4], 1

</llo_original>
